<compile_context>
chip_gen: v6e
topology: v6e:2x2x1
jax: 0.10.0
libtpu: 0.0.40
codegen_flags: <defaults>
</compile_context>

<pallas_src>
import jax
import jax.numpy as jnp
from jax.experimental import pallas as pl
from jax.experimental.pallas import tpu as pltpu

_LANE = 128
_SUBLANE = 8
_TILE_BYTES = 6 * 1024 * 1024          # per-tile budget; 4 buffers (2 in + 2 out) ~= 24 MiB
_VMEM_LIMIT = 48 * 1024 * 1024         # explicit scoped-VMEM limit (fits v5e/v6e/v7x)
_MIN_STRIDED_CHUNK_BYTES = 512         # below this, strided last-step DMA is inefficient


def _affine_sigmoid_kernel(w_ref, x_ref, o_ref):
    # w_ref: SMEM (2,) scalars [w1, w2] (scalar prefetch); x_ref/o_ref: VMEM tiles.
    w1 = w_ref[0]
    w2 = w_ref[1]
    z = x_ref[...].astype(jnp.float32) * w1 + w2
    # Exact sigmoid with a single EUP push per vreg: sigmoid(z) = 0.5*tanh(0.5*z) + 0.5
    o_ref[...] = (0.5 * jnp.tanh(0.5 * z) + 0.5).astype(o_ref.dtype)


def _round_up(v: int, m: int) -> int:
    return ((v + m - 1) // m) * m


def _pick_tiles(rows: int, cols: int, itemsize: int):
    """Pick (tile_rows, tile_cols) so one tile stays within the VMEM tile budget."""
    row_bytes = cols * itemsize
    if _SUBLANE * row_bytes <= _TILE_BYTES:
        # Full-width column blocks; choose the row-tile height.
        tr = _TILE_BYTES // row_bytes
        tr = max(_SUBLANE, (tr // _SUBLANE) * _SUBLANE)
        if tr >= rows:
            tr = rows
            # Keep >= 2 grid steps when possible so pipelining / core sharding engage.
            if rows >= 2 * _SUBLANE:
                tr = _round_up(-(-rows // 2), _SUBLANE)
        return tr, cols
    # A single full-width 8-row slab already exceeds the budget: tile the lane axis too.
    tc = _TILE_BYTES // (_SUBLANE * itemsize)
    tc = max(_LANE, (tc // _LANE) * _LANE)
    tc = min(tc, cols)
    return min(_SUBLANE, rows), tc


def _as_lane_dense_2d(flat: jnp.ndarray, prefer_cols: int):
    """Reshape a flat vector into a lane-dense (rows, cols) slab.

    Returns (x2d, pad) with x2d.reshape(-1)[:flat.size] == flat.  If no 128-multiple
    column factor divides the length, the lane axis is zero-padded (pad > 0).
    """
    n = flat.shape[0]
    if prefer_cols % _LANE == 0 and n % prefer_cols == 0:
        return flat.reshape(n // prefer_cols, prefer_cols), 0
    for c in (4096, 2048, 1024, 512, 256, 128):
        if n % c == 0:
            return flat.reshape(n // c, c), 0
    pad = (-n) % _LANE
    flat_p = jnp.pad(flat, (0, pad))
    return flat_p.reshape((n + pad) // _LANE, _LANE), pad


def _affine_sigmoid_2d(x2d: jnp.ndarray, w: jnp.ndarray, *,
                       tile_rows=None, tile_cols=None) -> jnp.ndarray:
    """sigmoid(x2d * w[0] + w[1]) with a (rows x lane-blocks) tiled, pipelined kernel."""
    rows, cols = x2d.shape
    tr, tc = _pick_tiles(rows, cols, x2d.dtype.itemsize)
    if tile_rows is not None:
        tr = min(tile_rows, rows)
    if tile_cols is not None:
        tc = min(tile_cols, cols)
    grid = (pl.cdiv(rows, tr), pl.cdiv(cols, tc))
    return pl.pallas_call(
        _affine_sigmoid_kernel,
        out_shape=jax.ShapeDtypeStruct((rows, cols), x2d.dtype),
        grid_spec=pltpu.PrefetchScalarGridSpec(
            num_scalar_prefetch=1,                    # w lands in SMEM before the grid runs
            grid=grid,
            in_specs=[pl.BlockSpec((tr, tc), lambda i, j, w_ref: (i, j))],
            out_specs=pl.BlockSpec((tr, tc), lambda i, j, w_ref: (i, j)),
        ),
        compiler_params=pltpu.CompilerParams(
            dimension_semantics=("parallel", "parallel"),
            vmem_limit_bytes=_VMEM_LIMIT),
    )(w, x2d)


def _affine_sigmoid_last_step(x_bc_sf: jnp.ndarray, w: jnp.ndarray, *,
                              seq: int, feat: int) -> jnp.ndarray:
    """sigmoid(last_seq_step(x) * w[0] + w[1]) for x viewed as (B*C, S*H*W).

    The last-step selection is folded into the input BlockSpec index_map (column
    block `seq - 1` of width `feat`), so no separate HBM->HBM slice pass is emitted.
    Caller guarantees feat % 128 == 0 and an 8-row full-feat block fits the budget.
    """
    rows = x_bc_sf.shape[0]
    tr, _ = _pick_tiles(rows, feat, x_bc_sf.dtype.itemsize)
    grid = (pl.cdiv(rows, tr),)
    return pl.pallas_call(
        _affine_sigmoid_kernel,
        out_shape=jax.ShapeDtypeStruct((rows, feat), x_bc_sf.dtype),
        grid_spec=pltpu.PrefetchScalarGridSpec(
            num_scalar_prefetch=1,
            grid=grid,
            in_specs=[pl.BlockSpec((tr, feat), lambda i, w_ref: (i, seq - 1))],
            out_specs=pl.BlockSpec((tr, feat), lambda i, w_ref: (i, 0)),
        ),
        compiler_params=pltpu.CompilerParams(
            dimension_semantics=("parallel",),
            vmem_limit_bytes=_VMEM_LIMIT),
    )(w, x_bc_sf)


def test_model_forward(x: jnp.ndarray,
                       w1: jnp.ndarray,
                       w2: jnp.ndarray,
                       return_sequences: bool = False) -> jnp.ndarray:
    """JAX/Pallas equivalent of TestModel.forward. x: (B, C, S, H, W)."""
    B, C, S, H, W = x.shape
    hw = H * W
    itemsize = x.dtype.itemsize
    w = jnp.concatenate([jnp.ravel(w1), jnp.ravel(w2)]).astype(jnp.float32)  # (2,)

    if return_sequences:
        x2d, pad = _as_lane_dense_2d(x.reshape(-1), hw)
        y2d = _affine_sigmoid_2d(x2d, w)
        yflat = y2d.reshape(-1)
        if pad:
            yflat = yflat[:x.size]
        return yflat.reshape(B, C, S, H, W)

    n_last = B * C * hw
    if (hw % _LANE == 0
            and hw * itemsize >= _MIN_STRIDED_CHUNK_BYTES
            and _SUBLANE * hw * itemsize <= _TILE_BYTES):
        # Fold the "-1 seq step" slice into the kernel's index_map (no extra HBM pass).
        x_view = x.reshape(B * C, S * hw)
        y2d = _affine_sigmoid_last_step(x_view, w, seq=S, feat=hw)
        return y2d.reshape(B, C, 1, H, W)

    # Fallback: materialize the slice once (contiguous HBM reads), then run the
    # lane-dense tiled kernel on a padded/reshaped slab (no masked partial stores).
    x_last_flat = x[:, :, -1, :, :].reshape(-1)
    x2d, pad = _as_lane_dense_2d(x_last_flat, hw)
    y2d = _affine_sigmoid_2d(x2d, w)
    yflat = y2d.reshape(-1)
    if pad:
        yflat = yflat[:n_last]
    return yflat.reshape(B, C, 1, H, W)


if __name__ == "__main__":
    key = jax.random.PRNGKey(0)
    B, C, S, H, W = 2, 4, 8, 16, 16
    x = jax.random.normal(key, (B, C, S, H, W), dtype=jnp.float32)

    # deterministic parameter init matching nn.Parameter(torch.ones(1))
    w1 = jnp.ones((1,), dtype=jnp.float32)
    w2 = jnp.ones((1,), dtype=jnp.float32)

    ref_seq = jax.nn.sigmoid(x * w1[0] + w2[0])
    ref_last = ref_seq[:, :, -1, :, :].reshape(B, C, 1, H, W)

    # return_sequences=False path (last seq step folded into the index_map)
    y = jax.block_until_ready(test_model_forward(x, w1, w2, return_sequences=False))
    assert y.shape == (B, C, 1, H, W)
    assert jnp.allclose(y, ref_last, atol=1e-5, rtol=1e-5), float(jnp.max(jnp.abs(y - ref_last)))

    # return_sequences=True path
    y_seq = jax.block_until_ready(test_model_forward(x, w1, w2, return_sequences=True))
    assert y_seq.shape == (B, C, S, H, W)
    assert jnp.allclose(y_seq, ref_seq, atol=1e-5, rtol=1e-5), float(jnp.max(jnp.abs(y_seq - ref_seq)))

    # Explicit multi-tile check: force several grid steps to exercise the
    # double-buffered pipeline (rows=64 -> 4 tiles of 16 rows).
    w_vec = jnp.concatenate([w1, w2]).astype(jnp.float32)
    x2d = x.reshape(B * C * S, H * W)
    y_tiled = jax.block_until_ready(_affine_sigmoid_2d(x2d, w_vec, tile_rows=16))
    assert jnp.allclose(y_tiled.reshape(B, C, S, H, W), ref_seq, atol=1e-5, rtol=1e-5)

    # Non-128-multiple spatial dims -> padded lane-dense fallback path.
    x_odd = jax.random.normal(jax.random.PRNGKey(1), (2, 3, 4, 5, 5), dtype=jnp.float32)
    ref_odd_seq = jax.nn.sigmoid(x_odd * w1[0] + w2[0])
    y_odd_seq = jax.block_until_ready(test_model_forward(x_odd, w1, w2, return_sequences=True))
    assert jnp.allclose(y_odd_seq, ref_odd_seq, atol=1e-5, rtol=1e-5)
    y_odd = jax.block_until_ready(test_model_forward(x_odd, w1, w2, return_sequences=False))
    ref_odd = ref_odd_seq[:, :, -1, :, :].reshape(2, 3, 1, 5, 5)
    assert jnp.allclose(y_odd, ref_odd, atol=1e-5, rtol=1e-5)

    print("KERNEL_OK")
</pallas_src>

<mosaic_0001>
module attributes {stable_mosaic.version = 11 : i64} {
  func.func @_affine_sigmoid_kernel(%arg0: i32, %arg1: memref<2xf32, #tpu.memory_space<smem>>, %arg2: memref<8x256xf32, #tpu.memory_space<vmem>>, %arg3: memref<8x256xf32, #tpu.memory_space<vmem>>) attributes {dimension_semantics = [#tpu.dimension_semantics<parallel>], iteration_bounds = array<i64: 1>, scalar_prefetch = 1 : i64, scratch_operands = 0 : i64, tpu.core_type = #tpu.core_type<tc>, window_params = [{transform_indices = @transform_0, window_bounds = array<i64: 8, 256>}, {transform_indices = @transform_1, window_bounds = array<i64: 8, 256>}]} {
    %c0 = arith.constant 0 : index
    %0 = memref.load %arg1[%c0] : memref<2xf32, #tpu.memory_space<smem>>
    %c1 = arith.constant 1 : index
    %1 = memref.load %arg1[%c1] : memref<2xf32, #tpu.memory_space<smem>>
    %c0_0 = arith.constant 0 : index
    %c0_1 = arith.constant 0 : index
    %2 = vector.load %arg2[%c0_0, %c0_1] : memref<8x256xf32, #tpu.memory_space<vmem>>, vector<8x256xf32>
    %3 = vector.broadcast %0 : f32 to vector<8x256xf32>
    %4 = arith.mulf %2, %3 : vector<8x256xf32>
    %5 = vector.broadcast %1 : f32 to vector<8x256xf32>
    %6 = arith.addf %4, %5 : vector<8x256xf32>
    %cst = arith.constant 5.000000e-01 : f32
    %7 = vector.broadcast %cst : f32 to vector<8x256xf32>
    %8 = arith.mulf %7, %6 : vector<8x256xf32>
    %9 = math.tanh %8 : vector<8x256xf32>
    %cst_2 = arith.constant 5.000000e-01 : f32
    %10 = vector.broadcast %cst_2 : f32 to vector<8x256xf32>
    %11 = arith.mulf %10, %9 : vector<8x256xf32>
    %cst_3 = arith.constant 5.000000e-01 : f32
    %12 = vector.broadcast %cst_3 : f32 to vector<8x256xf32>
    %13 = arith.addf %11, %12 : vector<8x256xf32>
    %c0_4 = arith.constant 0 : index
    %c0_5 = arith.constant 0 : index
    %14 = vector.load %arg3[%c0_4, %c0_5] : memref<8x256xf32, #tpu.memory_space<vmem>>, vector<8x256xf32>
    tpu.vector_store %arg3[%c0_4, %c0_5], %13 {strides = array<i32>} : memref<8x256xf32, #tpu.memory_space<vmem>>, vector<8x256xf32>,
    return
  }
  func.func @transform_0(%arg0: i32, %arg1: memref<2xf32, #tpu.memory_space<smem>>) -> (i32, i32) {
    %c7_i32 = arith.constant 7 : i32
    %c0_i32 = arith.constant 0 : i32
    return %arg0, %c7_i32 : i32, i32
  }
  func.func @transform_1(%arg0: i32, %arg1: memref<2xf32, #tpu.memory_space<smem>>) -> (i32, i32) {
    %c0_i32 = arith.constant 0 : i32
    %c0_i32_0 = arith.constant 0 : i32
    return %arg0, %c0_i32 : i32, i32
  }
}

</mosaic_0001>

<llo_original>
// kernel: tpu_custom_call.1
$region0: #{tpu_custom_call.1}
  #allocation0 [shape = 'u32[]', space=smem, size = 0x4, offset = 0x4, fixed_abs, tag = 'smem constant byte address 0x4 - core index']
  #allocation1 [shape = 'u32[144,128]{1,0:T(1,128)}', space=vmem, size = 0x12000, scoped, tag = 'internal scratch']
  #allocation2 [shape = 's32[1]{0}', space=sflag, size = 0x4, scoped, tag = 'scoped memory for tpu_custom_call.1']
  #allocation3 [shape = 'u8[512]{0}', space=smem, size = 0x200, scoped, tag = 'prefetched SMEM operand 0']
  %s0 = inlined_call_operand.hbm [shape: f32[2], index: 0, kind: input, shape index: {}]
  %s1 = inlined_call_operand.hbm [shape: f32[8,2048], index: 1, kind: input, shape index: {}]
  %s2 = inlined_call_operand.hbm [shape: f32[8,256], index: 2, kind: output, shape index: {}]
  %s3 = sld [smem:[#allocation0]]
  $region18: #{tpu_custom_call.1} parent=0
    _
  %s5 = ssub.s32 1, %s3
  %s6 = scalar_select 0, %s5, %s3
  %8 = dma.hbm_to_smem %s0, 16, [#allocation3], [#allocation2]
  %9 = dma.done [#allocation2], 16
  %10 = sfence
  $region1: #{tpu_custom_call.1} parent=0
    #allocation4 [shape = 'u8[8192]{0}', space=vmem, size = 0x2000, scoped, tag = 'input window, operand 1, single buffered']
    #allocation5 [shape = 's32[1]{0}', space=sflag, size = 0x4, scoped, tag = 'scoped memory for tpu_custom_call.1']
    #allocation6 [shape = 's32[1]{0}', space=sflag, size = 0x4, scoped, tag = 'scoped memory for tpu_custom_call.1']
    #allocation7 [shape = 'u8[8192]{0}', space=vmem, size = 0x2000, scoped, tag = 'output window, operand 0, single buffered']
    %11 = vsyncpa [#allocation5], 0
    %12 = vsyncpa [#allocation6], 0
    // Predicated region
    $region2: #{tpu_custom_call.1} parent=1 // pred_check
      _
    $region3: #{tpu_custom_call.1} parent=1 // pred_check_branch
      %14 = sbr.rel (0) target = $region5
    $region4: #{tpu_custom_call.1} parent=1 // pred_region
      %s16 = ssub.s32 256, 256
      %17 = vsyncadd [#allocation5], %s16
      %s18 = scalar_lea.hbm %s1, 1792
      %s20 = sshll.u32 [#allocation4], 4
      %s21 = int_to_ptr.vmem [resolvable:$true] %s20
      %23 = dma.hbm_to_vmem [thread:$0]  %s18, 256, %s21, [#allocation5]
    $region5: #{tpu_custom_call.1} parent=1 // pred_fallthru
      _
    // Predicated region
    $region6: #{tpu_custom_call.1} parent=1 // pred_check
      _
    $region7: #{tpu_custom_call.1} parent=1 // pred_check_branch
      %25 = sbr.rel (0) target = $region9
    $region8: #{tpu_custom_call.1} parent=1 // pred_region
      %26 = dma.done [#allocation5], 256
    $region9: #{tpu_custom_call.1} parent=1 // pred_fallthru
      _
    %s27 = sld [smem:[#allocation3]]
    %s28 = sld [smem:[#allocation3 + $0x1]]
    %v29 = vld [vmem:[#allocation4] sm:$0xff]
    %v30 = vld [vmem:[#allocation4 + $0x8] sm:$0xff]
    %v31 = vstv %s27
    %v32 = vmul.f32 %v29, %v31
    %v33 = vmul.f32 %v30, %v31
    %v34 = vstv %s28
    %v35 = vadd.f32 %v32, %v34
    %v36 = vadd.f32 %v33, %v34
    %v37 = vmul.f32 %v35, 0.5
    %v38 = vmul.f32 %v36, 0.5
    %v39 = vtanh.pop %v37
    %v40 = vtanh.pop %v38
    %v41 = vmul.f32 %v39, 0.5
    %v42 = vmul.f32 %v40, 0.5
    %v43 = vadd.f32 %v41, 0.5
    %v44 = vadd.f32 %v42, 0.5
    %45 = vst [vmem:[#allocation7] sm:$0xff] %v43
    %46 = vst [vmem:[#allocation7 + $0x8] sm:$0xff] %v44
    // Predicated region
    $region10: #{tpu_custom_call.1} parent=1 // pred_check
      _
    $region11: #{tpu_custom_call.1} parent=1 // pred_check_branch
      %48 = sbr.rel (0) target = $region13
    $region12: #{tpu_custom_call.1} parent=1 // pred_region
      %s50 = ssub.s32 256, 256
      %51 = vsyncadd [#allocation6], %s50
      %s53 = sshll.u32 [#allocation7], 4
      %s54 = int_to_ptr.vmem [resolvable:$true] %s53
      %56 = dma.vmem_to_hbm [thread:$0]  %s54, 256, %s2, [#allocation6]
    $region13: #{tpu_custom_call.1} parent=1 // pred_fallthru
      _
    // Predicated region
    $region14: #{tpu_custom_call.1} parent=1 // pred_check
      _
    $region15: #{tpu_custom_call.1} parent=1 // pred_check_branch
      %58 = sbr.rel (0) target = $region17
    $region16: #{tpu_custom_call.1} parent=1 // pred_region
      %59 = dma.done [#allocation6], 256
    $region17: #{tpu_custom_call.1} parent=1 // pred_fallthru
      _
    %60 = vsyncpa [#allocation5], 1
    %61 = vsyncpa [#allocation6], 1

</llo_original>
